<compile_context>
chip_gen: v6e
topology: v6e:2x2x1
jax: 0.10.0
libtpu: 0.0.40
codegen_flags: <defaults>
</compile_context>

<pallas_src>
import functools
import math

import jax
import jax.numpy as jnp
from jax import lax
from jax.experimental import pallas as pl
from jax.experimental.pallas import tpu as pltpu


def _adaln_kernel(x_ref, cond_ref, gamma_ref, beta_ref,
                  w1_ref, b1_ref, w2s_ref, b2s_ref, w2h_ref, b2h_ref,
                  out_ref, *, eps):
    # ---- LayerNorm(x) over last dim, f32 math, biased variance (PyTorch semantics) ----
    x = x_ref[...].astype(jnp.float32)                      # (tb, dim)
    mean = jnp.mean(x, axis=-1, keepdims=True)
    xc = x - mean
    var = jnp.mean(xc * xc, axis=-1, keepdims=True)
    x_norm = xc * lax.rsqrt(var + eps) * gamma_ref[...] + beta_ref[...]

    # ---- condition MLP: Linear -> SiLU -> Linear, matmuls in the weights' dtype ----
    c = cond_ref[...].astype(w1_ref.dtype)                  # (tb, cond_dim)
    h = jnp.dot(c, w1_ref[...], preferred_element_type=jnp.float32) + b1_ref[...]
    h = (h * jax.nn.sigmoid(h)).astype(w2s_ref.dtype)       # SiLU on EUP, cast for MXU
    scale = jnp.dot(h, w2s_ref[...], preferred_element_type=jnp.float32) + b2s_ref[...]
    shift = jnp.dot(h, w2h_ref[...], preferred_element_type=jnp.float32) + b2h_ref[...]

    # ---- single full-tile, lane-dense store ----
    out_ref[...] = (x_norm * (1.0 + scale) + shift).astype(out_ref.dtype)


def _round_up(n, m):
    return (n + m - 1) // m * m


def _pick_block_rows(n_rows, dim, itemsize, requested=None):
    if requested is None:
        target_bytes = 2 * 1024 * 1024                     # ~2 MiB x-tile per buffer
        requested = max(16, target_bytes // max(dim * itemsize, 1))
    requested = int(min(requested, 1024))
    tb = _round_up(min(requested, n_rows), 16)             # multiple of 16 (bf16 tiles)
    tb = min(tb, _round_up(n_rows, 8))                     # never much bigger than data
    # v7x megacore: keep at least 2 steps on the 'parallel' row axis when possible.
    if pl.cdiv(n_rows, tb) < 2 and n_rows > 16:
        tb = max(16, _round_up(pl.cdiv(n_rows, 2), 16))
    return max(int(tb), 8)


def _vmem_limit_bytes():
    try:
        cap = int(pltpu.get_tpu_info().vmem_capacity_bytes)
    except Exception:
        cap = 64 * 1024 * 1024                             # conservative (v7x per-TC)
    return min(int(cap * 0.85), 112 * 1024 * 1024)


def adaptive_layer_norm(x, condition, gamma, beta, w1, b1, w2, b2,
                        *, eps=1e-5, block_rows=None):
    """Fused AdaLN forward.

    x:          [..., dim]              (any float dtype; bf16 recommended)
    condition:  [..., condition_dim]    (same leading dims as x)
    gamma,beta: [dim]                   LayerNorm affine params
    w1: [condition_dim, 2*dim], b1: [2*dim]   (condition_proj[0], pre-transposed)
    w2: [2*dim, 2*dim],         b2: [2*dim]   (condition_proj[2], pre-transposed)

    Weights are used in their given dtype on the MXU (pass bf16 for single-pass MXU);
    accumulation and all LayerNorm / modulation math is f32.
    """
    dim = x.shape[-1]
    cond_dim = condition.shape[-1]
    assert x.shape[:-1] == condition.shape[:-1], "x / condition leading dims must match"
    assert w1.shape == (cond_dim, 2 * dim)
    assert w2.shape == (2 * dim, 2 * dim)

    out_dtype = x.dtype
    lead = x.shape[:-1]
    n_rows = math.prod(lead) if lead else 1

    # Native-dtype reshapes (collapse of leading dims: no HBM copy).
    x2 = x.reshape(n_rows, dim)
    c2 = condition.reshape(n_rows, cond_dim)

    # Small params -> f32 row vectors (tiny, one-time).
    g2 = gamma.reshape(1, dim).astype(jnp.float32)
    bt2 = beta.reshape(1, dim).astype(jnp.float32)
    b1_2 = b1.reshape(1, 2 * dim).astype(jnp.float32)
    # Pre-split second projection into scale / shift halves (native weight dtype).
    w2s = w2[:, :dim]
    w2h = w2[:, dim:]
    b2s = b2[:dim].reshape(1, dim).astype(jnp.float32)
    b2h = b2[dim:].reshape(1, dim).astype(jnp.float32)

    tb = _pick_block_rows(n_rows, dim, jnp.dtype(x.dtype).itemsize, block_rows)
    vmem_limit = _vmem_limit_bytes()
    grid = (pl.cdiv(n_rows, tb),)

    rows = lambda i: (i, 0)      # row-tiled operands
    const = lambda i: (0, 0)     # constant block index -> stays resident in VMEM

    def build(weight_pipeline_mode):
        def cspec(shape):
            if weight_pipeline_mode is None:
                return pl.BlockSpec(shape, const)
            return pl.BlockSpec(shape, const, pipeline_mode=weight_pipeline_mode)

        return pl.pallas_call(
            functools.partial(_adaln_kernel, eps=eps),
            out_shape=jax.ShapeDtypeStruct((n_rows, dim), out_dtype),
            grid=grid,
            in_specs=[
                pl.BlockSpec((tb, dim), rows),
                pl.BlockSpec((tb, cond_dim), rows),
                cspec((1, dim)),                 # gamma
                cspec((1, dim)),                 # beta
                cspec((cond_dim, 2 * dim)),      # w1
                cspec((1, 2 * dim)),             # b1
                cspec((2 * dim, dim)),           # w2 (scale half)
                cspec((1, dim)),                 # b2 (scale half)
                cspec((2 * dim, dim)),           # w2 (shift half)
                cspec((1, dim)),                 # b2 (shift half)
            ],
            out_specs=pl.BlockSpec((tb, dim), rows),
            compiler_params=pltpu.CompilerParams(
                dimension_semantics=("parallel",),
                vmem_limit_bytes=vmem_limit),
        )

    args = (x2, c2, g2, bt2, w1, b1_2, w2s, b2s, w2h, b2h)
    try:
        # Constant blocks don't need double buffers -- single-buffer the weights.
        out = build(pl.Buffered(1))(*args)
    except Exception:
        # Fallback if this Pallas build rejects single-buffered pipeline_mode.
        out = build(None)(*args)

    return out.reshape(*lead, dim)


def _reference(x, condition, gamma, beta, w1, b1, w2, b2, eps=1e-5):
    xf = x.astype(jnp.float32)
    mean = jnp.mean(xf, axis=-1, keepdims=True)
    var = jnp.mean((xf - mean) ** 2, axis=-1, keepdims=True)
    x_norm = (xf - mean) / jnp.sqrt(var + eps) * gamma.astype(jnp.float32) + beta.astype(jnp.float32)
    h = condition.astype(jnp.float32) @ w1.astype(jnp.float32) + b1.astype(jnp.float32)
    h = h * jax.nn.sigmoid(h)
    ss = h @ w2.astype(jnp.float32) + b2.astype(jnp.float32)
    scale, shift = jnp.split(ss, 2, axis=-1)
    return x_norm * (1.0 + scale) + shift


if __name__ == "__main__":
    key = jax.random.PRNGKey(0)
    B, S, dim, cond_dim = 2, 8, 32, 16
    ks = jax.random.split(key, 8)

    # Activations / weights in bf16 (the intended fast path); LN params & biases f32.
    x = jax.random.normal(ks[0], (B, S, dim), dtype=jnp.float32).astype(jnp.bfloat16)
    condition = jax.random.normal(ks[1], (B, S, cond_dim), dtype=jnp.float32).astype(jnp.bfloat16)

    gamma = (1.0 + 0.1 * jax.random.normal(ks[2], (dim,))).astype(jnp.float32)
    beta = (0.1 * jax.random.normal(ks[3], (dim,))).astype(jnp.float32)
    w1 = (jax.random.normal(ks[4], (cond_dim, 2 * dim)) / math.sqrt(cond_dim)).astype(jnp.bfloat16)
    b1 = (0.1 * jax.random.normal(ks[5], (2 * dim,))).astype(jnp.float32)
    w2 = (jax.random.normal(ks[6], (2 * dim, 2 * dim)) / math.sqrt(2 * dim)).astype(jnp.bfloat16)
    b2 = (0.1 * jax.random.normal(ks[7], (2 * dim,))).astype(jnp.float32)

    out = adaptive_layer_norm(x, condition, gamma, beta, w1, b1, w2, b2)
    out = jax.block_until_ready(out)

    ref = _reference(x, condition, gamma, beta, w1, b1, w2, b2)
    assert out.shape == (B, S, dim) and out.dtype == x.dtype
    max_err = float(jnp.max(jnp.abs(out.astype(jnp.float32) - ref)))
    assert jnp.allclose(out.astype(jnp.float32), ref, atol=5e-2, rtol=5e-2), max_err
    print("KERNEL_OK")
</pallas_src>

<mosaic_0001>
module attributes {stable_mosaic.version = 11 : i64} {
  func.func @_adaln_kernel(%arg0: i32, %arg1: memref<16x32xbf16, #tpu.memory_space<vmem>>, %arg2: memref<16x16xbf16, #tpu.memory_space<vmem>>, %arg3: memref<1x32xf32, #tpu.memory_space<vmem>>, %arg4: memref<1x32xf32, #tpu.memory_space<vmem>>, %arg5: memref<16x64xbf16, #tpu.memory_space<vmem>>, %arg6: memref<1x64xf32, #tpu.memory_space<vmem>>, %arg7: memref<64x32xbf16, #tpu.memory_space<vmem>>, %arg8: memref<1x32xf32, #tpu.memory_space<vmem>>, %arg9: memref<64x32xbf16, #tpu.memory_space<vmem>>, %arg10: memref<1x32xf32, #tpu.memory_space<vmem>>, %arg11: memref<16x32xbf16, #tpu.memory_space<vmem>>) attributes {dimension_semantics = [#tpu.dimension_semantics<parallel>], iteration_bounds = array<i64: 1>, scalar_prefetch = 0 : i64, scratch_operands = 0 : i64, tpu.core_type = #tpu.core_type<tc>, window_params = [{transform_indices = @transform_0, window_bounds = array<i64: 16, 32>}, {transform_indices = @transform_1, window_bounds = array<i64: 16, 16>}, {pipeline_mode = #tpu.pipeline_mode<synchronous>, transform_indices = @transform_2, window_bounds = array<i64: 1, 32>}, {pipeline_mode = #tpu.pipeline_mode<synchronous>, transform_indices = @transform_3, window_bounds = array<i64: 1, 32>}, {pipeline_mode = #tpu.pipeline_mode<synchronous>, transform_indices = @transform_4, window_bounds = array<i64: 16, 64>}, {pipeline_mode = #tpu.pipeline_mode<synchronous>, transform_indices = @transform_5, window_bounds = array<i64: 1, 64>}, {pipeline_mode = #tpu.pipeline_mode<synchronous>, transform_indices = @transform_6, window_bounds = array<i64: 64, 32>}, {pipeline_mode = #tpu.pipeline_mode<synchronous>, transform_indices = @transform_7, window_bounds = array<i64: 1, 32>}, {pipeline_mode = #tpu.pipeline_mode<synchronous>, transform_indices = @transform_8, window_bounds = array<i64: 64, 32>}, {pipeline_mode = #tpu.pipeline_mode<synchronous>, transform_indices = @transform_9, window_bounds = array<i64: 1, 32>}, {transform_indices = @transform_10, window_bounds = array<i64: 16, 32>}]} {
    %c0 = arith.constant 0 : index
    %c0_0 = arith.constant 0 : index
    %0 = vector.load %arg1[%c0, %c0_0] : memref<16x32xbf16, #tpu.memory_space<vmem>>, vector<16x32xbf16>
    %1 = arith.extf %0 : vector<16x32xbf16> to vector<16x32xf32>
    %cst = arith.constant dense<0.000000e+00> : vector<16xf32>
    %2 = vector.multi_reduction <add>, %1, %cst [1] : vector<16x32xf32> to vector<16xf32>
    %3 = vector.shape_cast %2 : vector<16xf32> to vector<16x1xf32>
    %cst_1 = arith.constant 3.200000e+01 : f32
    %4 = vector.broadcast %cst_1 : f32 to vector<16x1xf32>
    %5 = arith.divf %3, %4 : vector<16x1xf32>
    %6 = vector.broadcast %5 : vector<16x1xf32> to vector<16x32xf32>
    %7 = arith.subf %1, %6 : vector<16x32xf32>
    %8 = arith.mulf %7, %7 : vector<16x32xf32>
    %cst_2 = arith.constant dense<0.000000e+00> : vector<16xf32>
    %9 = vector.multi_reduction <add>, %8, %cst_2 [1] : vector<16x32xf32> to vector<16xf32>
    %10 = vector.shape_cast %9 : vector<16xf32> to vector<16x1xf32>
    %cst_3 = arith.constant 3.200000e+01 : f32
    %11 = vector.broadcast %cst_3 : f32 to vector<16x1xf32>
    %12 = arith.divf %10, %11 : vector<16x1xf32>
    %cst_4 = arith.constant 9.99999974E-6 : f32
    %13 = vector.broadcast %cst_4 : f32 to vector<16x1xf32>
    %14 = arith.addf %12, %13 : vector<16x1xf32>
    %15 = math.rsqrt %14 : vector<16x1xf32>
    %16 = vector.broadcast %15 : vector<16x1xf32> to vector<16x32xf32>
    %17 = arith.mulf %7, %16 : vector<16x32xf32>
    %c0_5 = arith.constant 0 : index
    %c0_6 = arith.constant 0 : index
    %18 = vector.load %arg3[%c0_5, %c0_6] : memref<1x32xf32, #tpu.memory_space<vmem>>, vector<1x32xf32>
    %19 = vector.broadcast %18 : vector<1x32xf32> to vector<16x32xf32>
    %20 = arith.mulf %17, %19 : vector<16x32xf32>
    %c0_7 = arith.constant 0 : index
    %c0_8 = arith.constant 0 : index
    %21 = vector.load %arg4[%c0_7, %c0_8] : memref<1x32xf32, #tpu.memory_space<vmem>>, vector<1x32xf32>
    %22 = vector.broadcast %21 : vector<1x32xf32> to vector<16x32xf32>
    %23 = arith.addf %20, %22 : vector<16x32xf32>
    %c0_9 = arith.constant 0 : index
    %c0_10 = arith.constant 0 : index
    %24 = vector.load %arg2[%c0_9, %c0_10] : memref<16x16xbf16, #tpu.memory_space<vmem>>, vector<16x16xbf16>
    %c0_11 = arith.constant 0 : index
    %c0_12 = arith.constant 0 : index
    %25 = vector.load %arg5[%c0_11, %c0_12] : memref<16x64xbf16, #tpu.memory_space<vmem>>, vector<16x64xbf16>
    %cst_13 = arith.constant dense<0.000000e+00> : vector<16x64xf32>
    %26 = tpu.matmul %24, %25, %cst_13 {dimension_numbers = #tpu.dot_dimension_numbers<[1], [0], [0], [1], [0, 0, 1, 1], [], []>} : vector<16x16xbf16>, vector<16x64xbf16>, vector<16x64xf32> -> vector<16x64xf32>
    %c0_14 = arith.constant 0 : index
    %c0_15 = arith.constant 0 : index
    %27 = vector.load %arg6[%c0_14, %c0_15] : memref<1x64xf32, #tpu.memory_space<vmem>>, vector<1x64xf32>
    %28 = vector.broadcast %27 : vector<1x64xf32> to vector<16x64xf32>
    %29 = arith.addf %26, %28 : vector<16x64xf32>
    %30 = arith.negf %29 : vector<16x64xf32>
    %31 = math.exp %30 : vector<16x64xf32>
    %cst_16 = arith.constant 1.000000e+00 : f32
    %32 = vector.broadcast %cst_16 : f32 to vector<16x64xf32>
    %33 = arith.addf %32, %31 : vector<16x64xf32>
    %34 = arith.divf %32, %33 : vector<16x64xf32>
    %35 = arith.mulf %29, %34 : vector<16x64xf32>
    %36 = arith.truncf %35 : vector<16x64xf32> to vector<16x64xbf16>
    %c0_17 = arith.constant 0 : index
    %c0_18 = arith.constant 0 : index
    %37 = vector.load %arg7[%c0_17, %c0_18] : memref<64x32xbf16, #tpu.memory_space<vmem>>, vector<64x32xbf16>
    %cst_19 = arith.constant dense<0.000000e+00> : vector<16x32xf32>
    %38 = tpu.matmul %36, %37, %cst_19 {dimension_numbers = #tpu.dot_dimension_numbers<[1], [0], [0], [1], [0, 0, 1, 1], [], []>} : vector<16x64xbf16>, vector<64x32xbf16>, vector<16x32xf32> -> vector<16x32xf32>
    %c0_20 = arith.constant 0 : index
    %c0_21 = arith.constant 0 : index
    %39 = vector.load %arg8[%c0_20, %c0_21] : memref<1x32xf32, #tpu.memory_space<vmem>>, vector<1x32xf32>
    %40 = vector.broadcast %39 : vector<1x32xf32> to vector<16x32xf32>
    %41 = arith.addf %38, %40 : vector<16x32xf32>
    %c0_22 = arith.constant 0 : index
    %c0_23 = arith.constant 0 : index
    %42 = vector.load %arg9[%c0_22, %c0_23] : memref<64x32xbf16, #tpu.memory_space<vmem>>, vector<64x32xbf16>
    %cst_24 = arith.constant dense<0.000000e+00> : vector<16x32xf32>
    %43 = tpu.matmul %36, %42, %cst_24 {dimension_numbers = #tpu.dot_dimension_numbers<[1], [0], [0], [1], [0, 0, 1, 1], [], []>} : vector<16x64xbf16>, vector<64x32xbf16>, vector<16x32xf32> -> vector<16x32xf32>
    %c0_25 = arith.constant 0 : index
    %c0_26 = arith.constant 0 : index
    %44 = vector.load %arg10[%c0_25, %c0_26] : memref<1x32xf32, #tpu.memory_space<vmem>>, vector<1x32xf32>
    %45 = vector.broadcast %44 : vector<1x32xf32> to vector<16x32xf32>
    %46 = arith.addf %43, %45 : vector<16x32xf32>
    %cst_27 = arith.constant 1.000000e+00 : f32
    %47 = vector.broadcast %cst_27 : f32 to vector<16x32xf32>
    %48 = arith.addf %47, %41 : vector<16x32xf32>
    %49 = arith.mulf %23, %48 : vector<16x32xf32>
    %50 = arith.addf %49, %46 : vector<16x32xf32>
    %51 = arith.truncf %50 : vector<16x32xf32> to vector<16x32xbf16>
    %c0_28 = arith.constant 0 : index
    %c0_29 = arith.constant 0 : index
    %52 = vector.load %arg11[%c0_28, %c0_29] : memref<16x32xbf16, #tpu.memory_space<vmem>>, vector<16x32xbf16>
    tpu.vector_store %arg11[%c0_28, %c0_29], %51 {strides = array<i32>} : memref<16x32xbf16, #tpu.memory_space<vmem>>, vector<16x32xbf16>,
    return
  }
  func.func @transform_0(%arg0: i32) -> (i32, i32) {
    %c0_i32 = arith.constant 0 : i32
    %c0_i32_0 = arith.constant 0 : i32
    return %arg0, %c0_i32 : i32, i32
  }
  func.func @transform_1(%arg0: i32) -> (i32, i32) {
    %c0_i32 = arith.constant 0 : i32
    %c0_i32_0 = arith.constant 0 : i32
    return %arg0, %c0_i32 : i32, i32
  }
  func.func @transform_2(%arg0: i32) -> (i32, i32) {
    %c0_i32 = arith.constant 0 : i32
    %c0_i32_0 = arith.constant 0 : i32
    %c0_i32_1 = arith.constant 0 : i32
    return %c0_i32, %c0_i32_0 : i32, i32
  }
  func.func @transform_3(%arg0: i32) -> (i32, i32) {
    %c0_i32 = arith.constant 0 : i32
    %c0_i32_0 = arith.constant 0 : i32
    %c0_i32_1 = arith.constant 0 : i32
    return %c0_i32, %c0_i32_0 : i32, i32
  }
  func.func @transform_4(%arg0: i32) -> (i32, i32) {
    %c0_i32 = arith.constant 0 : i32
    %c0_i32_0 = arith.constant 0 : i32
    %c0_i32_1 = arith.constant 0 : i32
    return %c0_i32, %c0_i32_0 : i32, i32
  }
  func.func @transform_5(%arg0: i32) -> (i32, i32) {
    %c0_i32 = arith.constant 0 : i32
    %c0_i32_0 = arith.constant 0 : i32
    %c0_i32_1 = arith.constant 0 : i32
    return %c0_i32, %c0_i32_0 : i32, i32
  }
  func.func @transform_6(%arg0: i32) -> (i32, i32) {
    %c0_i32 = arith.constant 0 : i32
    %c0_i32_0 = arith.constant 0 : i32
    %c0_i32_1 = arith.constant 0 : i32
    return %c0_i32, %c0_i32_0 : i32, i32
  }
  func.func @transform_7(%arg0: i32) -> (i32, i32) {
    %c0_i32 = arith.constant 0 : i32
    %c0_i32_0 = arith.constant 0 : i32
    %c0_i32_1 = arith.constant 0 : i32
    return %c0_i32, %c0_i32_0 : i32, i32
  }
  func.func @transform_8(%arg0: i32) -> (i32, i32) {
    %c0_i32 = arith.constant 0 : i32
    %c0_i32_0 = arith.constant 0 : i32
    %c0_i32_1 = arith.constant 0 : i32
    return %c0_i32, %c0_i32_0 : i32, i32
  }
  func.func @transform_9(%arg0: i32) -> (i32, i32) {
    %c0_i32 = arith.constant 0 : i32
    %c0_i32_0 = arith.constant 0 : i32
    %c0_i32_1 = arith.constant 0 : i32
    return %c0_i32, %c0_i32_0 : i32, i32
  }
  func.func @transform_10(%arg0: i32) -> (i32, i32) {
    %c0_i32 = arith.constant 0 : i32
    %c0_i32_0 = arith.constant 0 : i32
    return %arg0, %c0_i32 : i32, i32
  }
}

module attributes {stable_mosaic.version = 11 : i64} {
  func.func @_adaln_kernel(%arg0: i32, %arg1: memref<16x32xbf16, #tpu.memory_space<vmem>>, %arg2: memref<16x16xbf16, #tpu.memory_space<vmem>>, %arg3: memref<1x32xf32, #tpu.memory_space<vmem>>, %arg4: memref<1x32xf32, #tpu.memory_space<vmem>>, %arg5: memref<16x64xbf16, #tpu.memory_space<vmem>>, %arg6: memref<1x64xf32, #tpu.memory_space<vmem>>, %arg7: memref<64x32xbf16, #tpu.memory_space<vmem>>, %arg8: memref<1x32xf32, #tpu.memory_space<vmem>>, %arg9: memref<64x32xbf16, #tpu.memory_space<vmem>>, %arg10: memref<1x32xf32, #tpu.memory_space<vmem>>, %arg11: memref<16x32xbf16, #tpu.memory_space<vmem>>) attributes {dimension_semantics = [#tpu.dimension_semantics<parallel>], iteration_bounds = array<i64: 1>, scalar_prefetch = 0 : i64, scratch_operands = 0 : i64, tpu.core_type = #tpu.core_type<tc>, window_params = [{transform_indices = @transform_0, window_bounds = array<i64: 16, 32>}, {transform_indices = @transform_1, window_bounds = array<i64: 16, 16>}, {pipeline_mode = #tpu.pipeline_mode<synchronous>, transform_indices = @transform_2, window_bounds = array<i64: 1, 32>}, {pipeline_mode = #tpu.pipeline_mode<synchronous>, transform_indices = @transform_3, window_bounds = array<i64: 1, 32>}, {pipeline_mode = #tpu.pipeline_mode<synchronous>, transform_indices = @transform_4, window_bounds = array<i64: 16, 64>}, {pipeline_mode = #tpu.pipeline_mode<synchronous>, transform_indices = @transform_5, window_bounds = array<i64: 1, 64>}, {pipeline_mode = #tpu.pipeline_mode<synchronous>, transform_indices = @transform_6, window_bounds = array<i64: 64, 32>}, {pipeline_mode = #tpu.pipeline_mode<synchronous>, transform_indices = @transform_7, window_bounds = array<i64: 1, 32>}, {pipeline_mode = #tpu.pipeline_mode<synchronous>, transform_indices = @transform_8, window_bounds = array<i64: 64, 32>}, {pipeline_mode = #tpu.pipeline_mode<synchronous>, transform_indices = @transform_9, window_bounds = array<i64: 1, 32>}, {transform_indices = @transform_10, window_bounds = array<i64: 16, 32>}]} {
    %c0 = arith.constant 0 : index
    %c0_0 = arith.constant 0 : index
    %0 = vector.load %arg1[%c0, %c0_0] : memref<16x32xbf16, #tpu.memory_space<vmem>>, vector<16x32xbf16>
    %1 = arith.extf %0 : vector<16x32xbf16> to vector<16x32xf32>
    %cst = arith.constant dense<0.000000e+00> : vector<16xf32>
    %2 = vector.multi_reduction <add>, %1, %cst [1] : vector<16x32xf32> to vector<16xf32>
    %3 = vector.shape_cast %2 : vector<16xf32> to vector<16x1xf32>
    %cst_1 = arith.constant 3.200000e+01 : f32
    %4 = vector.broadcast %cst_1 : f32 to vector<16x1xf32>
    %5 = arith.divf %3, %4 : vector<16x1xf32>
    %6 = vector.broadcast %5 : vector<16x1xf32> to vector<16x32xf32>
    %7 = arith.subf %1, %6 : vector<16x32xf32>
    %8 = arith.mulf %7, %7 : vector<16x32xf32>
    %cst_2 = arith.constant dense<0.000000e+00> : vector<16xf32>
    %9 = vector.multi_reduction <add>, %8, %cst_2 [1] : vector<16x32xf32> to vector<16xf32>
    %10 = vector.shape_cast %9 : vector<16xf32> to vector<16x1xf32>
    %cst_3 = arith.constant 3.200000e+01 : f32
    %11 = vector.broadcast %cst_3 : f32 to vector<16x1xf32>
    %12 = arith.divf %10, %11 : vector<16x1xf32>
    %cst_4 = arith.constant 9.99999974E-6 : f32
    %13 = vector.broadcast %cst_4 : f32 to vector<16x1xf32>
    %14 = arith.addf %12, %13 : vector<16x1xf32>
    %15 = math.rsqrt %14 : vector<16x1xf32>
    %16 = vector.broadcast %15 : vector<16x1xf32> to vector<16x32xf32>
    %17 = arith.mulf %7, %16 : vector<16x32xf32>
    %c0_5 = arith.constant 0 : index
    %c0_6 = arith.constant 0 : index
    %18 = vector.load %arg3[%c0_5, %c0_6] : memref<1x32xf32, #tpu.memory_space<vmem>>, vector<1x32xf32>
    %19 = vector.broadcast %18 : vector<1x32xf32> to vector<16x32xf32>
    %20 = arith.mulf %17, %19 : vector<16x32xf32>
    %c0_7 = arith.constant 0 : index
    %c0_8 = arith.constant 0 : index
    %21 = vector.load %arg4[%c0_7, %c0_8] : memref<1x32xf32, #tpu.memory_space<vmem>>, vector<1x32xf32>
    %22 = vector.broadcast %21 : vector<1x32xf32> to vector<16x32xf32>
    %23 = arith.addf %20, %22 : vector<16x32xf32>
    %c0_9 = arith.constant 0 : index
    %c0_10 = arith.constant 0 : index
    %24 = vector.load %arg2[%c0_9, %c0_10] : memref<16x16xbf16, #tpu.memory_space<vmem>>, vector<16x16xbf16>
    %c0_11 = arith.constant 0 : index
    %c0_12 = arith.constant 0 : index
    %25 = vector.load %arg5[%c0_11, %c0_12] : memref<16x64xbf16, #tpu.memory_space<vmem>>, vector<16x64xbf16>
    %cst_13 = arith.constant dense<0.000000e+00> : vector<16x64xf32>
    %26 = tpu.matmul %24, %25, %cst_13 {dimension_numbers = #tpu.dot_dimension_numbers<[1], [0], [0], [1], [0, 0, 1, 1], [], []>} : vector<16x16xbf16>, vector<16x64xbf16>, vector<16x64xf32> -> vector<16x64xf32>
    %c0_14 = arith.constant 0 : index
    %c0_15 = arith.constant 0 : index
    %27 = vector.load %arg6[%c0_14, %c0_15] : memref<1x64xf32, #tpu.memory_space<vmem>>, vector<1x64xf32>
    %28 = vector.broadcast %27 : vector<1x64xf32> to vector<16x64xf32>
    %29 = arith.addf %26, %28 : vector<16x64xf32>
    %30 = arith.negf %29 : vector<16x64xf32>
    %31 = math.exp %30 : vector<16x64xf32>
    %cst_16 = arith.constant 1.000000e+00 : f32
    %32 = vector.broadcast %cst_16 : f32 to vector<16x64xf32>
    %33 = arith.addf %32, %31 : vector<16x64xf32>
    %34 = arith.divf %32, %33 : vector<16x64xf32>
    %35 = arith.mulf %29, %34 : vector<16x64xf32>
    %36 = arith.truncf %35 : vector<16x64xf32> to vector<16x64xbf16>
    %c0_17 = arith.constant 0 : index
    %c0_18 = arith.constant 0 : index
    %37 = vector.load %arg7[%c0_17, %c0_18] : memref<64x32xbf16, #tpu.memory_space<vmem>>, vector<64x32xbf16>
    %cst_19 = arith.constant dense<0.000000e+00> : vector<16x32xf32>
    %38 = tpu.matmul %36, %37, %cst_19 {dimension_numbers = #tpu.dot_dimension_numbers<[1], [0], [0], [1], [0, 0, 1, 1], [], []>} : vector<16x64xbf16>, vector<64x32xbf16>, vector<16x32xf32> -> vector<16x32xf32>
    %c0_20 = arith.constant 0 : index
    %c0_21 = arith.constant 0 : index
    %39 = vector.load %arg8[%c0_20, %c0_21] : memref<1x32xf32, #tpu.memory_space<vmem>>, vector<1x32xf32>
    %40 = vector.broadcast %39 : vector<1x32xf32> to vector<16x32xf32>
    %41 = arith.addf %38, %40 : vector<16x32xf32>
    %c0_22 = arith.constant 0 : index
    %c0_23 = arith.constant 0 : index
    %42 = vector.load %arg9[%c0_22, %c0_23] : memref<64x32xbf16, #tpu.memory_space<vmem>>, vector<64x32xbf16>
    %cst_24 = arith.constant dense<0.000000e+00> : vector<16x32xf32>
    %43 = tpu.matmul %36, %42, %cst_24 {dimension_numbers = #tpu.dot_dimension_numbers<[1], [0], [0], [1], [0, 0, 1, 1], [], []>} : vector<16x64xbf16>, vector<64x32xbf16>, vector<16x32xf32> -> vector<16x32xf32>
    %c0_25 = arith.constant 0 : index
    %c0_26 = arith.constant 0 : index
    %44 = vector.load %arg10[%c0_25, %c0_26] : memref<1x32xf32, #tpu.memory_space<vmem>>, vector<1x32xf32>
    %45 = vector.broadcast %44 : vector<1x32xf32> to vector<16x32xf32>
    %46 = arith.addf %43, %45 : vector<16x32xf32>
    %cst_27 = arith.constant 1.000000e+00 : f32
    %47 = vector.broadcast %cst_27 : f32 to vector<16x32xf32>
    %48 = arith.addf %47, %41 : vector<16x32xf32>
    %49 = arith.mulf %23, %48 : vector<16x32xf32>
    %50 = arith.addf %49, %46 : vector<16x32xf32>
    %51 = arith.truncf %50 : vector<16x32xf32> to vector<16x32xbf16>
    %c0_28 = arith.constant 0 : index
    %c0_29 = arith.constant 0 : index
    %52 = vector.load %arg11[%c0_28, %c0_29] : memref<16x32xbf16, #tpu.memory_space<vmem>>, vector<16x32xbf16>
    tpu.vector_store %arg11[%c0_28, %c0_29], %51 {strides = array<i32>} : memref<16x32xbf16, #tpu.memory_space<vmem>>, vector<16x32xbf16>,
    return
  }
  func.func @transform_0(%arg0: i32) -> (i32, i32) {
    %c0_i32 = arith.constant 0 : i32
    %c0_i32_0 = arith.constant 0 : i32
    return %arg0, %c0_i32 : i32, i32
  }
  func.func @transform_1(%arg0: i32) -> (i32, i32) {
    %c0_i32 = arith.constant 0 : i32
    %c0_i32_0 = arith.constant 0 : i32
    return %arg0, %c0_i32 : i32, i32
  }
  func.func @transform_2(%arg0: i32) -> (i32, i32) {
    %c0_i32 = arith.constant 0 : i32
    %c0_i32_0 = arith.constant 0 : i32
    %c0_i32_1 = arith.constant 0 : i32
    return %c0_i32, %c0_i32_0 : i32, i32
  }
  func.func @transform_3(%arg0: i32) -> (i32, i32) {
    %c0_i32 = arith.constant 0 : i32
    %c0_i32_0 = arith.constant 0 : i32
    %c0_i32_1 = arith.constant 0 : i32
    return %c0_i32, %c0_i32_0 : i32, i32
  }
  func.func @transform_4(%arg0: i32) -> (i32, i32) {
    %c0_i32 = arith.constant 0 : i32
    %c0_i32_0 = arith.constant 0 : i32
    %c0_i32_1 = arith.constant 0 : i32
    return %c0_i32, %c0_i32_0 : i32, i32
  }
  func.func @transform_5(%arg0: i32) -> (i32, i32) {
    %c0_i32 = arith.constant 0 : i32
    %c0_i32_0 = arith.constant 0 : i32
    %c0_i32_1 = arith.constant 0 : i32
    return %c0_i32, %c0_i32_0 : i32, i32
  }
  func.func @transform_6(%arg0: i32) -> (i32, i32) {
    %c0_i32 = arith.constant 0 : i32
    %c0_i32_0 = arith.constant 0 : i32
    %c0_i32_1 = arith.constant 0 : i32
    return %c0_i32, %c0_i32_0 : i32, i32
  }
  func.func @transform_7(%arg0: i32) -> (i32, i32) {
    %c0_i32 = arith.constant 0 : i32
    %c0_i32_0 = arith.constant 0 : i32
    %c0_i32_1 = arith.constant 0 : i32
    return %c0_i32, %c0_i32_0 : i32, i32
  }
  func.func @transform_8(%arg0: i32) -> (i32, i32) {
    %c0_i32 = arith.constant 0 : i32
    %c0_i32_0 = arith.constant 0 : i32
    %c0_i32_1 = arith.constant 0 : i32
    return %c0_i32, %c0_i32_0 : i32, i32
  }
  func.func @transform_9(%arg0: i32) -> (i32, i32) {
    %c0_i32 = arith.constant 0 : i32
    %c0_i32_0 = arith.constant 0 : i32
    %c0_i32_1 = arith.constant 0 : i32
    return %c0_i32, %c0_i32_0 : i32, i32
  }
  func.func @transform_10(%arg0: i32) -> (i32, i32) {
    %c0_i32 = arith.constant 0 : i32
    %c0_i32_0 = arith.constant 0 : i32
    return %arg0, %c0_i32 : i32, i32
  }
}

</mosaic_0001>

<llo_original>
// kernel: tpu_custom_call.1
$region0: #{tpu_custom_call.1}
  #allocation0 [shape = 'u32[]', space=smem, size = 0x4, offset = 0x4, fixed_abs, tag = 'smem constant byte address 0x4 - core index']
  #allocation1 [shape = 'u32[144,128]{1,0:T(1,128)}', space=vmem, size = 0x12000, scoped, tag = 'internal scratch']
  %s0 = inlined_call_operand.vmem [shape: bf16[16,32], index: 0, kind: input, shape index: {}]
  %s1 = inlined_call_operand.vmem [shape: bf16[16,16], index: 1, kind: input, shape index: {}]
  %s2 = inlined_call_operand.vmem [shape: f32[1,32], index: 2, kind: input, shape index: {}]
  %s3 = inlined_call_operand.vmem [shape: f32[1,32], index: 3, kind: input, shape index: {}]
  %s4 = inlined_call_operand.vmem [shape: bf16[16,64], index: 4, kind: input, shape index: {}]
  %s5 = inlined_call_operand.vmem [shape: f32[1,64], index: 5, kind: input, shape index: {}]
  %s6 = inlined_call_operand.vmem [shape: bf16[64,32], index: 6, kind: input, shape index: {}]
  %s7 = inlined_call_operand.vmem [shape: f32[1,32], index: 7, kind: input, shape index: {}]
  %s8 = inlined_call_operand.vmem [shape: bf16[64,32], index: 8, kind: input, shape index: {}]
  %s9 = inlined_call_operand.vmem [shape: f32[1,32], index: 9, kind: input, shape index: {}]
  %s10 = inlined_call_operand.hbm [shape: bf16[16,32], index: 10, kind: output, shape index: {}]
  %s11 = sld [smem:[#allocation0]]
  $region50: #{tpu_custom_call.1} parent=0
    _
  %s13 = ssub.s32 1, %s11
  %s14 = scalar_select 0, %s13, %s11
  $region1: #{tpu_custom_call.1} parent=0
    #allocation2 [shape = 'u8[4096]{0}', space=vmem, size = 0x1000, scoped, tag = 'output window, operand 0, single buffered']
    #allocation3 [shape = 's32[1]{0}', space=sflag, size = 0x4, scoped, tag = 'scoped memory for tpu_custom_call.1']
    %15 = vsyncpa [#allocation3], 0
    // Predicated region
    $region2: #{tpu_custom_call.1} parent=1 // pred_check
      _
    $region3: #{tpu_custom_call.1} parent=1 // pred_check_branch
      %17 = sbr.rel (0) target = $region5
    $region4: #{tpu_custom_call.1} parent=1 // pred_region
      _
    $region5: #{tpu_custom_call.1} parent=1 // pred_fallthru
      _
    // Predicated region
    $region6: #{tpu_custom_call.1} parent=1 // pred_check
      _
    $region7: #{tpu_custom_call.1} parent=1 // pred_check_branch
      %19 = sbr.rel (0) target = $region9
    $region8: #{tpu_custom_call.1} parent=1 // pred_region
      _
    $region9: #{tpu_custom_call.1} parent=1 // pred_fallthru
      _
    // Predicated region
    $region10: #{tpu_custom_call.1} parent=1 // pred_check
      _
    $region11: #{tpu_custom_call.1} parent=1 // pred_check_branch
      %21 = sbr.rel (0) target = $region13
    $region12: #{tpu_custom_call.1} parent=1 // pred_region
      _
    $region13: #{tpu_custom_call.1} parent=1 // pred_fallthru
      _
    // Predicated region
    $region14: #{tpu_custom_call.1} parent=1 // pred_check
      _
    $region15: #{tpu_custom_call.1} parent=1 // pred_check_branch
      %23 = sbr.rel (0) target = $region17
    $region16: #{tpu_custom_call.1} parent=1 // pred_region
      _
    $region17: #{tpu_custom_call.1} parent=1 // pred_fallthru
      _
    // Predicated region
    $region18: #{tpu_custom_call.1} parent=1 // pred_check
      _
    $region19: #{tpu_custom_call.1} parent=1 // pred_check_branch
      %25 = sbr.rel (0) target = $region21
    $region20: #{tpu_custom_call.1} parent=1 // pred_region
      _
    $region21: #{tpu_custom_call.1} parent=1 // pred_fallthru
      _
    // Predicated region
    $region22: #{tpu_custom_call.1} parent=1 // pred_check
      _
    $region23: #{tpu_custom_call.1} parent=1 // pred_check_branch
      %27 = sbr.rel (0) target = $region25
    $region24: #{tpu_custom_call.1} parent=1 // pred_region
      _
    $region25: #{tpu_custom_call.1} parent=1 // pred_fallthru
      _
    // Predicated region
    $region26: #{tpu_custom_call.1} parent=1 // pred_check
      _
    $region27: #{tpu_custom_call.1} parent=1 // pred_check_branch
      %29 = sbr.rel (0) target = $region29
    $region28: #{tpu_custom_call.1} parent=1 // pred_region
      _
    $region29: #{tpu_custom_call.1} parent=1 // pred_fallthru
      _
    // Predicated region
    $region30: #{tpu_custom_call.1} parent=1 // pred_check
      _
    $region31: #{tpu_custom_call.1} parent=1 // pred_check_branch
      %31 = sbr.rel (0) target = $region33
    $region32: #{tpu_custom_call.1} parent=1 // pred_region
      _
    $region33: #{tpu_custom_call.1} parent=1 // pred_fallthru
      _
    // Predicated region
    $region34: #{tpu_custom_call.1} parent=1 // pred_check
      _
    $region35: #{tpu_custom_call.1} parent=1 // pred_check_branch
      %33 = sbr.rel (0) target = $region37
    $region36: #{tpu_custom_call.1} parent=1 // pred_region
      _
    $region37: #{tpu_custom_call.1} parent=1 // pred_fallthru
      _
    // Predicated region
    $region38: #{tpu_custom_call.1} parent=1 // pred_check
      _
    $region39: #{tpu_custom_call.1} parent=1 // pred_check_branch
      %35 = sbr.rel (0) target = $region41
    $region40: #{tpu_custom_call.1} parent=1 // pred_region
      _
    $region41: #{tpu_custom_call.1} parent=1 // pred_fallthru
      _
    %v37 = vld [vmem:[%s0] sm:$0xf]
    %v38 = vld [vmem:[%s0 + $0x4] sm:$0xf]
    %v39 = vunpack.c.l.bf16 %v37
    %v40 = vunpack.c.l.bf16 %v38
    %vm41 = vcmask 261120
    %v42 = vsel %vm41, %v39, 0.0
    %43 = vadd.xlane.f32.xlu0 %v42
    %v44 = vpop.xlane.xlu0 %43
    %v45 = vsel %vm41, %v40, 0.0
    %46 = vadd.xlane.f32.xlu0 %v45
    %v47 = vpop.xlane.xlu0 %46
    %v48 = vrcp.pop 32.0
    %v49 = vmul.f32 %v44, %v48
    %v50 = vmul.f32 %v47, %v48
    %v51 = vsub.f32 %v39, %v49
    %v52 = vsub.f32 %v40, %v50
    %v53 = vmul.f32 %v51, %v51
    %v54 = vmul.f32 %v52, %v52
    %v55 = vsel %vm41, %v53, 0.0
    %56 = vadd.xlane.f32.xlu0 %v55
    %v57 = vpop.xlane.xlu0 %56
    %v58 = vsel %vm41, %v54, 0.0
    %59 = vadd.xlane.f32.xlu0 %v58
    %v60 = vpop.xlane.xlu0 %59
    %v61 = vmul.f32 %v57, %v48
    %v62 = vmul.f32 %v60, %v48
    %v63 = vadd.f32 %v61, 1e-05
    %v64 = vadd.f32 %v62, 1e-05
    %v65 = vrsqrt.pop %v63
    %v66 = vrsqrt.pop %v64
    %v67 = vmul.f32 %v51, %v65
    %v68 = vmul.f32 %v52, %v66
    %v69 = vld [vmem:[%s2] sm:$0x1]
    %v71 = vlaneseq
    %v72 = vshrl.u32 %v71, 7
    %v73 = vsub.s32 0, %v72
    %v74 = vrot.slane %v69, %v73
    %v76 = vmul.f32 %v67, %v74
    %v77 = vmul.f32 %v68, %v74
    %v78 = vld [vmem:[%s3] sm:$0x1]
    %v80 = vlaneseq
    %v81 = vshrl.u32 %v80, 7
    %v82 = vsub.s32 0, %v81
    %v83 = vrot.slane %v78, %v82
    %v85 = vadd.f32 %v76, %v83
    %v86 = vadd.f32 %v77, %v83
    %v87 = vld [vmem:[%s1] sm:$0xf]
    %v88 = vld [vmem:[%s1 + $0x4] sm:$0xf]
    %v89 = vld [vmem:[%s4] sm:$0xf]
    %v90 = vld [vmem:[%s4 + $0x4] sm:$0xf]
    %v91 = vld [vmem:[%s5] sm:$0x1]
    %v93 = vlaneseq
    %v94 = vshrl.u32 %v93, 7
    %v95 = vsub.s32 0, %v94
    %v96 = vrot.slane %v91, %v95
    %v100 = vunpack.c.l.b16 %v87
    %v101 = vunpack.c.l.b16 %v88
    %v102 = vpack.c.b16 %v101, %v100
    %v105 = vunpack.c.l.b16 %v89
    %v106 = vunpack.c.l.b16 %v90
    %v107 = vpack.c.b16 %v106, %v105
    %vm109 = vcmask 130048
    %v111 = vsel %vm109, %v102, 0
    %113 = vmatprep.subr.bf16.mxu0 0
    %114 = vmatpush1.bf16.msra.mxu0 0
    %115 = vmatprep.subr.bf16.mxu0 0
    %116 = vmatpush1.bf16.msra.mxu0 0
    %117 = vmatprep.subr.bf16.mxu0 0
    %118 = vmatpush1.bf16.msra.mxu0 0
    %119 = vmatprep.subr.bf16.mxu0 0
    %120 = vmatpush1.bf16.msra.mxu0 0
    %121 = vmatprep.subr.bf16.mxu0 0
    %122 = vmatpush1.bf16.msra.mxu0 0
    %123 = vmatprep.subr.bf16.mxu0 0
    %124 = vmatpush1.bf16.msra.mxu0 0
    %125 = vmatprep.subr.bf16.mxu0 0
    %126 = vmatpush1.bf16.msra.mxu0 0
    %127 = vmatprep.subr.bf16.mxu0 0
    %128 = vmatpush1.bf16.msra.mxu0 %v107
    %129 = vmatprep.subr.bf16.mxu0 0
    %130 = vmatpush2.bf16.msra.mxu0 0
    %131 = vmatprep.subr.bf16.mxu0 0
    %132 = vmatpush2.bf16.msra.mxu0 0
    %133 = vmatprep.subr.bf16.mxu0 0
    %134 = vmatpush2.bf16.msra.mxu0 0
    %135 = vmatprep.subr.bf16.mxu0 0
    %136 = vmatpush2.bf16.msra.mxu0 0
    %137 = vmatprep.subr.bf16.mxu0 0
    %138 = vmatpush2.bf16.msra.mxu0 0
    %139 = vmatprep.subr.bf16.mxu0 0
    %140 = vmatpush2.bf16.msra.mxu0 0
    %141 = vmatprep.subr.bf16.mxu0 0
    %142 = vmatpush2.bf16.msra.mxu0 0
    %143 = vmatprep.subr.bf16.mxu0 0
    %144 = vmatpush2.bf16.msra.mxu0 0
    %145 = vmatprep.mubr.bf16.mxu0 0
    %146 = vmatmul.mubr.bf16.gmra.mxu0 %v111
    %v147 = vpop.f32.mrf.mxu0
    %v148 = vadd.f32 %v96, %v147
    %v149 = vpop.f32.mrf.mxu0
    %v150 = vpop.f32.mrf.mxu0
    %v151 = vadd.f32 %v96, %v150
    %v152 = vpop.f32.mrf.mxu0
    %153 = vdwg.mxu0
    %v154 = vxor.u32 %v148, 2147483648
    %v155 = vxor.u32 %v151, 2147483648
    %v156 = vmul.f32 %v154, 1.442695
    %v157 = vpow.pop %v156
    %v158 = vmul.f32 %v155, 1.442695
    %v159 = vpow.pop %v158
    %v160 = vadd.f32 %v157, 1.0
    %v161 = vadd.f32 %v159, 1.0
    %v162 = vrcp.pop %v160
    %v163 = vmul.f32 1.0, %v162
    %v164 = vrcp.pop %v161
    %v165 = vmul.f32 1.0, %v164
    %v166 = vmul.f32 %v148, %v163
    %v167 = vmul.f32 %v151, %v165
    %v168 = vpack.c.bf16 %v167, %v166
    %v169 = vld [vmem:[%s6] sm:$0xf]
    %v170 = vld [vmem:[%s6 + $0x4] sm:$0xf]
    %v171 = vld [vmem:[%s6 + $0x8] sm:$0xf]
    %v172 = vld [vmem:[%s6 + $0xc] sm:$0xf]
    %v173 = vld [vmem:[%s6 + $0x10] sm:$0xf]
    %v174 = vld [vmem:[%s6 + $0x14] sm:$0xf]
    %v175 = vld [vmem:[%s6 + $0x18] sm:$0xf]
    %v176 = vld [vmem:[%s6 + $0x1c] sm:$0xf]
    %v177 = vld [vmem:[%s7] sm:$0x1]
    %v179 = vlaneseq
    %v180 = vshrl.u32 %v179, 7
    %v181 = vsub.s32 0, %v180
    %v182 = vrot.slane %v177, %v181
    %v192 = vunpack.c.l.b16 %v169
    %v193 = vunpack.c.l.b16 %v170
    %v194 = vunpack.c.l.b16 %v171
    %v195 = vunpack.c.l.b16 %v172
    %v196 = vunpack.c.l.b16 %v173
    %v197 = vunpack.c.l.b16 %v174
    %v198 = vunpack.c.l.b16 %v175
    %v199 = vunpack.c.l.b16 %v176
    %v200 = vpack.c.b16 %v193, %v192
    %v201 = vpack.c.b16 %v195, %v194
    %v202 = vpack.c.b16 %v197, %v196
    %v203 = vpack.c.b16 %v199, %v198
    %vm208 = vcmask 523264
    %v210 = vsel %vm208, %v168, 0
    %212 = vmatprep.subr.bf16.mxu0 0
    %213 = vmatpush1.bf16.msra.mxu0 0
    %214 = vmatprep.subr.bf16.mxu0 0
    %215 = vmatpush1.bf16.msra.mxu0 0
    %216 = vmatprep.subr.bf16.mxu0 0
    %217 = vmatpush1.bf16.msra.mxu0 0
    %218 = vmatprep.subr.bf16.mxu0 0
    %219 = vmatpush1.bf16.msra.mxu0 0
    %220 = vmatprep.subr.bf16.mxu0 0
    %221 = vmatpush1.bf16.msra.mxu0 %v203
    %222 = vmatprep.subr.bf16.mxu0 0
    %223 = vmatpush1.bf16.msra.mxu0 %v202
    %224 = vmatprep.subr.bf16.mxu0 0
    %225 = vmatpush1.bf16.msra.mxu0 %v201
    %226 = vmatprep.subr.bf16.mxu0 0
    %227 = vmatpush1.bf16.msra.mxu0 %v200
    %228 = vmatprep.subr.bf16.mxu0 0
    %229 = vmatpush2.bf16.msra.mxu0 0
    %230 = vmatprep.subr.bf16.mxu0 0
    %231 = vmatpush2.bf16.msra.mxu0 0
    %232 = vmatprep.subr.bf16.mxu0 0
    %233 = vmatpush2.bf16.msra.mxu0 0
    %234 = vmatprep.subr.bf16.mxu0 0
    %235 = vmatpush2.bf16.msra.mxu0 0
    %236 = vmatprep.subr.bf16.mxu0 0
    %237 = vmatpush2.bf16.msra.mxu0 0
    %238 = vmatprep.subr.bf16.mxu0 0
    %239 = vmatpush2.bf16.msra.mxu0 0
    %240 = vmatprep.subr.bf16.mxu0 0
    %241 = vmatpush2.bf16.msra.mxu0 0
    %242 = vmatprep.subr.bf16.mxu0 0
    %243 = vmatpush2.bf16.msra.mxu0 0
    %244 = vmatprep.mubr.bf16.mxu0 0
    %245 = vmatmul.mubr.bf16.gmra.mxu0 %v210
    %v246 = vpop.f32.mrf.mxu0
    %v247 = vadd.f32 %v182, %v246
    %v248 = vpop.f32.mrf.mxu0
    %v249 = vpop.f32.mrf.mxu0
    %v250 = vadd.f32 %v182, %v249
    %v251 = vpop.f32.mrf.mxu0
    %252 = vdwg.mxu0
    %v253 = vld [vmem:[%s8] sm:$0xf]
    %v254 = vld [vmem:[%s8 + $0x4] sm:$0xf]
    %v255 = vld [vmem:[%s8 + $0x8] sm:$0xf]
    %v256 = vld [vmem:[%s8 + $0xc] sm:$0xf]
    %v257 = vld [vmem:[%s8 + $0x10] sm:$0xf]
    %v258 = vld [vmem:[%s8 + $0x14] sm:$0xf]
    %v259 = vld [vmem:[%s8 + $0x18] sm:$0xf]
    %v260 = vld [vmem:[%s8 + $0x1c] sm:$0xf]
    %v261 = vld [vmem:[%s9] sm:$0x1]
    %v263 = vlaneseq
    %v264 = vshrl.u32 %v263, 7
    %v265 = vsub.s32 0, %v264
    %v266 = vrot.slane %v261, %v265
    %v276 = vunpack.c.l.b16 %v253
    %v277 = vunpack.c.l.b16 %v254
    %v278 = vunpack.c.l.b16 %v255
    %v279 = vunpack.c.l.b16 %v256
    %v280 = vunpack.c.l.b16 %v257
    %v281 = vunpack.c.l.b16 %v258
    %v282 = vunpack.c.l.b16 %v259
    %v283 = vunpack.c.l.b16 %v260
    %v284 = vpack.c.b16 %v277, %v276
    %v285 = vpack.c.b16 %v279, %v278
    %v286 = vpack.c.b16 %v281, %v280
    %v287 = vpack.c.b16 %v283, %v282
    %292 = vmatprep.subr.bf16.mxu0 0
    %293 = vmatpush1.bf16.msra.mxu0 0
    %294 = vmatprep.subr.bf16.mxu0 0
    %295 = vmatpush1.bf16.msra.mxu0 0
    %296 = vmatprep.subr.bf16.mxu0 0
    %297 = vmatpush1.bf16.msra.mxu0 0
    %298 = vmatprep.subr.bf16.mxu0 0
    %299 = vmatpush1.bf16.msra.mxu0 0
    %300 = vmatprep.subr.bf16.mxu0 0
    %301 = vmatpush1.bf16.msra.mxu0 %v287
    %302 = vmatprep.subr.bf16.mxu0 0
    %303 = vmatpush1.bf16.msra.mxu0 %v286
    %304 = vmatprep.subr.bf16.mxu0 0
    %305 = vmatpush1.bf16.msra.mxu0 %v285
    %306 = vmatprep.subr.bf16.mxu0 0
    %307 = vmatpush1.bf16.msra.mxu0 %v284
    %308 = vmatprep.subr.bf16.mxu0 0
    %309 = vmatpush2.bf16.msra.mxu0 0
    %310 = vmatprep.subr.bf16.mxu0 0
    %311 = vmatpush2.bf16.msra.mxu0 0
    %312 = vmatprep.subr.bf16.mxu0 0
    %313 = vmatpush2.bf16.msra.mxu0 0
    %314 = vmatprep.subr.bf16.mxu0 0
    %315 = vmatpush2.bf16.msra.mxu0 0
    %316 = vmatprep.subr.bf16.mxu0 0
    %317 = vmatpush2.bf16.msra.mxu0 0
    %318 = vmatprep.subr.bf16.mxu0 0
    %319 = vmatpush2.bf16.msra.mxu0 0
    %320 = vmatprep.subr.bf16.mxu0 0
    %321 = vmatpush2.bf16.msra.mxu0 0
    %322 = vmatprep.subr.bf16.mxu0 0
    %323 = vmatpush2.bf16.msra.mxu0 0
    %324 = vmatprep.mubr.bf16.mxu0 0
    %325 = vmatmul.mubr.bf16.gmra.mxu0 %v210
    %v326 = vpop.f32.mrf.mxu0
    %v327 = vadd.f32 %v266, %v326
    %v328 = vpop.f32.mrf.mxu0
    %v329 = vpop.f32.mrf.mxu0
    %v330 = vadd.f32 %v266, %v329
    %v331 = vpop.f32.mrf.mxu0
    %332 = vdwg.mxu0
    %v333 = vadd.f32 %v247, 1.0
    %v334 = vadd.f32 %v250, 1.0
    %v335 = vmul.f32 %v85, %v333
    %v336 = vmul.f32 %v86, %v334
    %v337 = vadd.f32 %v335, %v327
    %v338 = vadd.f32 %v336, %v330
    %v339 = vpack.c.bf16 %v338, %v337
    %v341 = vunpack.c.l.b16 %v339
    %v342 = vunpack.c.h.b16 %v339
    %v343 = vpack.c.b16 %v341, %v341
    %v344 = vpack.c.b16 %v342, %v342
    %vm347 = vcmask 257024
    %348 = vst.msk [vmem:[#allocation2] sm:$0xf] %vm347, %v343
    %349 = vst.msk [vmem:[#allocation2 + $0x4] sm:$0xf] %vm347, %v344
    // Predicated region
    $region42: #{tpu_custom_call.1} parent=1 // pred_check
      _
    $region43: #{tpu_custom_call.1} parent=1 // pred_check_branch
      %351 = sbr.rel (0) target = $region45
    $region44: #{tpu_custom_call.1} parent=1 // pred_region
      %s353 = ssub.s32 128, 128
      %354 = vsyncadd [#allocation3], %s353
      %s355 = sshll.u32 [#allocation2], 4
      %s356 = int_to_ptr.vmem [resolvable:$true] %s355
      %361 = dma.vmem_to_hbm [thread:$0]  %s356, 128, %s10, [#allocation3], 64, 64, 4
    $region45: #{tpu_custom_call.1} parent=1 // pred_fallthru
      _
    // Predicated region
    $region46: #{tpu_custom_call.1} parent=1 // pred_check
      _
    $region47: #{tpu_custom_call.1} parent=1 // pred_check_branch
      %363 = sbr.rel (0) target = $region49
    $region48: #{tpu_custom_call.1} parent=1 // pred_region
      %364 = dma.done [#allocation3], 128
    $region49: #{tpu_custom_call.1} parent=1 // pred_fallthru
      _
    %365 = vsyncpa [#allocation3], 1

// kernel: tpu_custom_call.1
$region0: #{tpu_custom_call.1}
  #allocation0 [shape = 'u32[]', space=smem, size = 0x4, offset = 0x4, fixed_abs, tag = 'smem constant byte address 0x4 - core index']
  #allocation1 [shape = 'u32[144,128]{1,0:T(1,128)}', space=vmem, size = 0x12000, scoped, tag = 'internal scratch']
  %s0 = inlined_call_operand.vmem [shape: bf16[16,32], index: 0, kind: input, shape index: {}]
  %s1 = inlined_call_operand.vmem [shape: bf16[16,16], index: 1, kind: input, shape index: {}]
  %s2 = inlined_call_operand.vmem [shape: f32[1,32], index: 2, kind: input, shape index: {}]
  %s3 = inlined_call_operand.vmem [shape: f32[1,32], index: 3, kind: input, shape index: {}]
  %s4 = inlined_call_operand.vmem [shape: bf16[16,64], index: 4, kind: input, shape index: {}]
  %s5 = inlined_call_operand.vmem [shape: f32[1,64], index: 5, kind: input, shape index: {}]
  %s6 = inlined_call_operand.vmem [shape: bf16[64,32], index: 6, kind: input, shape index: {}]
  %s7 = inlined_call_operand.vmem [shape: f32[1,32], index: 7, kind: input, shape index: {}]
  %s8 = inlined_call_operand.vmem [shape: bf16[64,32], index: 8, kind: input, shape index: {}]
  %s9 = inlined_call_operand.vmem [shape: f32[1,32], index: 9, kind: input, shape index: {}]
  %s10 = inlined_call_operand.hbm [shape: bf16[16,32], index: 10, kind: output, shape index: {}]
  %s11 = sld [smem:[#allocation0]]
  $region50: #{tpu_custom_call.1} parent=0
    _
  %s13 = ssub.s32 1, %s11
  %s14 = scalar_select 0, %s13, %s11
  $region1: #{tpu_custom_call.1} parent=0
    #allocation2 [shape = 'u8[4096]{0}', space=vmem, size = 0x1000, scoped, tag = 'output window, operand 0, single buffered']
    #allocation3 [shape = 's32[1]{0}', space=sflag, size = 0x4, scoped, tag = 'scoped memory for tpu_custom_call.1']
    %15 = vsyncpa [#allocation3], 0
    // Predicated region
    $region2: #{tpu_custom_call.1} parent=1 // pred_check
      _
    $region3: #{tpu_custom_call.1} parent=1 // pred_check_branch
      %17 = sbr.rel (0) target = $region5
    $region4: #{tpu_custom_call.1} parent=1 // pred_region
      _
    $region5: #{tpu_custom_call.1} parent=1 // pred_fallthru
      _
    // Predicated region
    $region6: #{tpu_custom_call.1} parent=1 // pred_check
      _
    $region7: #{tpu_custom_call.1} parent=1 // pred_check_branch
      %19 = sbr.rel (0) target = $region9
    $region8: #{tpu_custom_call.1} parent=1 // pred_region
      _
    $region9: #{tpu_custom_call.1} parent=1 // pred_fallthru
      _
    // Predicated region
    $region10: #{tpu_custom_call.1} parent=1 // pred_check
      _
    $region11: #{tpu_custom_call.1} parent=1 // pred_check_branch
      %21 = sbr.rel (0) target = $region13
    $region12: #{tpu_custom_call.1} parent=1 // pred_region
      _
    $region13: #{tpu_custom_call.1} parent=1 // pred_fallthru
      _
    // Predicated region
    $region14: #{tpu_custom_call.1} parent=1 // pred_check
      _
    $region15: #{tpu_custom_call.1} parent=1 // pred_check_branch
      %23 = sbr.rel (0) target = $region17
    $region16: #{tpu_custom_call.1} parent=1 // pred_region
      _
    $region17: #{tpu_custom_call.1} parent=1 // pred_fallthru
      _
    // Predicated region
    $region18: #{tpu_custom_call.1} parent=1 // pred_check
      _
    $region19: #{tpu_custom_call.1} parent=1 // pred_check_branch
      %25 = sbr.rel (0) target = $region21
    $region20: #{tpu_custom_call.1} parent=1 // pred_region
      _
    $region21: #{tpu_custom_call.1} parent=1 // pred_fallthru
      _
    // Predicated region
    $region22: #{tpu_custom_call.1} parent=1 // pred_check
      _
    $region23: #{tpu_custom_call.1} parent=1 // pred_check_branch
      %27 = sbr.rel (0) target = $region25
    $region24: #{tpu_custom_call.1} parent=1 // pred_region
      _
    $region25: #{tpu_custom_call.1} parent=1 // pred_fallthru
      _
    // Predicated region
    $region26: #{tpu_custom_call.1} parent=1 // pred_check
      _
    $region27: #{tpu_custom_call.1} parent=1 // pred_check_branch
      %29 = sbr.rel (0) target = $region29
    $region28: #{tpu_custom_call.1} parent=1 // pred_region
      _
    $region29: #{tpu_custom_call.1} parent=1 // pred_fallthru
      _
    // Predicated region
    $region30: #{tpu_custom_call.1} parent=1 // pred_check
      _
    $region31: #{tpu_custom_call.1} parent=1 // pred_check_branch
      %31 = sbr.rel (0) target = $region33
    $region32: #{tpu_custom_call.1} parent=1 // pred_region
      _
    $region33: #{tpu_custom_call.1} parent=1 // pred_fallthru
      _
    // Predicated region
    $region34: #{tpu_custom_call.1} parent=1 // pred_check
      _
    $region35: #{tpu_custom_call.1} parent=1 // pred_check_branch
      %33 = sbr.rel (0) target = $region37
    $region36: #{tpu_custom_call.1} parent=1 // pred_region
      _
    $region37: #{tpu_custom_call.1} parent=1 // pred_fallthru
      _
    // Predicated region
    $region38: #{tpu_custom_call.1} parent=1 // pred_check
      _
    $region39: #{tpu_custom_call.1} parent=1 // pred_check_branch
      %35 = sbr.rel (0) target = $region41
    $region40: #{tpu_custom_call.1} parent=1 // pred_region
      _
    $region41: #{tpu_custom_call.1} parent=1 // pred_fallthru
      _
    %v37 = vld [vmem:[%s0] sm:$0xf]
    %v38 = vld [vmem:[%s0 + $0x4] sm:$0xf]
    %v39 = vunpack.c.l.bf16 %v37
    %v40 = vunpack.c.l.bf16 %v38
    %vm41 = vcmask 261120
    %v42 = vsel %vm41, %v39, 0.0
    %43 = vadd.xlane.f32.xlu0 %v42
    %v44 = vpop.xlane.xlu0 %43
    %v45 = vsel %vm41, %v40, 0.0
    %46 = vadd.xlane.f32.xlu0 %v45
    %v47 = vpop.xlane.xlu0 %46
    %v48 = vrcp.pop 32.0
    %v49 = vmul.f32 %v44, %v48
    %v50 = vmul.f32 %v47, %v48
    %v51 = vsub.f32 %v39, %v49
    %v52 = vsub.f32 %v40, %v50
    %v53 = vmul.f32 %v51, %v51
    %v54 = vmul.f32 %v52, %v52
    %v55 = vsel %vm41, %v53, 0.0
    %56 = vadd.xlane.f32.xlu0 %v55
    %v57 = vpop.xlane.xlu0 %56
    %v58 = vsel %vm41, %v54, 0.0
    %59 = vadd.xlane.f32.xlu0 %v58
    %v60 = vpop.xlane.xlu0 %59
    %v61 = vmul.f32 %v57, %v48
    %v62 = vmul.f32 %v60, %v48
    %v63 = vadd.f32 %v61, 1e-05
    %v64 = vadd.f32 %v62, 1e-05
    %v65 = vrsqrt.pop %v63
    %v66 = vrsqrt.pop %v64
    %v67 = vmul.f32 %v51, %v65
    %v68 = vmul.f32 %v52, %v66
    %v69 = vld [vmem:[%s2] sm:$0x1]
    %v71 = vlaneseq
    %v72 = vshrl.u32 %v71, 7
    %v73 = vsub.s32 0, %v72
    %v74 = vrot.slane %v69, %v73
    %v76 = vmul.f32 %v67, %v74
    %v77 = vmul.f32 %v68, %v74
    %v78 = vld [vmem:[%s3] sm:$0x1]
    %v80 = vlaneseq
    %v81 = vshrl.u32 %v80, 7
    %v82 = vsub.s32 0, %v81
    %v83 = vrot.slane %v78, %v82
    %v85 = vadd.f32 %v76, %v83
    %v86 = vadd.f32 %v77, %v83
    %v87 = vld [vmem:[%s1] sm:$0xf]
    %v88 = vld [vmem:[%s1 + $0x4] sm:$0xf]
    %v89 = vld [vmem:[%s4] sm:$0xf]
    %v90 = vld [vmem:[%s4 + $0x4] sm:$0xf]
    %v91 = vld [vmem:[%s5] sm:$0x1]
    %v93 = vlaneseq
    %v94 = vshrl.u32 %v93, 7
    %v95 = vsub.s32 0, %v94
    %v96 = vrot.slane %v91, %v95
    %v100 = vunpack.c.l.b16 %v87
    %v101 = vunpack.c.l.b16 %v88
    %v102 = vpack.c.b16 %v101, %v100
    %v105 = vunpack.c.l.b16 %v89
    %v106 = vunpack.c.l.b16 %v90
    %v107 = vpack.c.b16 %v106, %v105
    %vm109 = vcmask 130048
    %v111 = vsel %vm109, %v102, 0
    %113 = vmatprep.subr.bf16.mxu0 0
    %114 = vmatpush1.bf16.msra.mxu0 0
    %115 = vmatprep.subr.bf16.mxu0 0
    %116 = vmatpush1.bf16.msra.mxu0 0
    %117 = vmatprep.subr.bf16.mxu0 0
    %118 = vmatpush1.bf16.msra.mxu0 0
    %119 = vmatprep.subr.bf16.mxu0 0
    %120 = vmatpush1.bf16.msra.mxu0 0
    %121 = vmatprep.subr.bf16.mxu0 0
    %122 = vmatpush1.bf16.msra.mxu0 0
    %123 = vmatprep.subr.bf16.mxu0 0
    %124 = vmatpush1.bf16.msra.mxu0 0
    %125 = vmatprep.subr.bf16.mxu0 0
    %126 = vmatpush1.bf16.msra.mxu0 0
    %127 = vmatprep.subr.bf16.mxu0 0
    %128 = vmatpush1.bf16.msra.mxu0 %v107
    %129 = vmatprep.subr.bf16.mxu0 0
    %130 = vmatpush2.bf16.msra.mxu0 0
    %131 = vmatprep.subr.bf16.mxu0 0
    %132 = vmatpush2.bf16.msra.mxu0 0
    %133 = vmatprep.subr.bf16.mxu0 0
    %134 = vmatpush2.bf16.msra.mxu0 0
    %135 = vmatprep.subr.bf16.mxu0 0
    %136 = vmatpush2.bf16.msra.mxu0 0
    %137 = vmatprep.subr.bf16.mxu0 0
    %138 = vmatpush2.bf16.msra.mxu0 0
    %139 = vmatprep.subr.bf16.mxu0 0
    %140 = vmatpush2.bf16.msra.mxu0 0
    %141 = vmatprep.subr.bf16.mxu0 0
    %142 = vmatpush2.bf16.msra.mxu0 0
    %143 = vmatprep.subr.bf16.mxu0 0
    %144 = vmatpush2.bf16.msra.mxu0 0
    %145 = vmatprep.mubr.bf16.mxu0 0
    %146 = vmatmul.mubr.bf16.gmra.mxu0 %v111
    %v147 = vpop.f32.mrf.mxu0
    %v148 = vadd.f32 %v96, %v147
    %v149 = vpop.f32.mrf.mxu0
    %v150 = vpop.f32.mrf.mxu0
    %v151 = vadd.f32 %v96, %v150
    %v152 = vpop.f32.mrf.mxu0
    %153 = vdwg.mxu0
    %v154 = vxor.u32 %v148, 2147483648
    %v155 = vxor.u32 %v151, 2147483648
    %v156 = vmul.f32 %v154, 1.442695
    %v157 = vpow.pop %v156
    %v158 = vmul.f32 %v155, 1.442695
    %v159 = vpow.pop %v158
    %v160 = vadd.f32 %v157, 1.0
    %v161 = vadd.f32 %v159, 1.0
    %v162 = vrcp.pop %v160
    %v163 = vmul.f32 1.0, %v162
    %v164 = vrcp.pop %v161
    %v165 = vmul.f32 1.0, %v164
    %v166 = vmul.f32 %v148, %v163
    %v167 = vmul.f32 %v151, %v165
    %v168 = vpack.c.bf16 %v167, %v166
    %v169 = vld [vmem:[%s6] sm:$0xf]
    %v170 = vld [vmem:[%s6 + $0x4] sm:$0xf]
    %v171 = vld [vmem:[%s6 + $0x8] sm:$0xf]
    %v172 = vld [vmem:[%s6 + $0xc] sm:$0xf]
    %v173 = vld [vmem:[%s6 + $0x10] sm:$0xf]
    %v174 = vld [vmem:[%s6 + $0x14] sm:$0xf]
    %v175 = vld [vmem:[%s6 + $0x18] sm:$0xf]
    %v176 = vld [vmem:[%s6 + $0x1c] sm:$0xf]
    %v177 = vld [vmem:[%s7] sm:$0x1]
    %v179 = vlaneseq
    %v180 = vshrl.u32 %v179, 7
    %v181 = vsub.s32 0, %v180
    %v182 = vrot.slane %v177, %v181
    %v192 = vunpack.c.l.b16 %v169
    %v193 = vunpack.c.l.b16 %v170
    %v194 = vunpack.c.l.b16 %v171
    %v195 = vunpack.c.l.b16 %v172
    %v196 = vunpack.c.l.b16 %v173
    %v197 = vunpack.c.l.b16 %v174
    %v198 = vunpack.c.l.b16 %v175
    %v199 = vunpack.c.l.b16 %v176
    %v200 = vpack.c.b16 %v193, %v192
    %v201 = vpack.c.b16 %v195, %v194
    %v202 = vpack.c.b16 %v197, %v196
    %v203 = vpack.c.b16 %v199, %v198
    %vm208 = vcmask 523264
    %v210 = vsel %vm208, %v168, 0
    %212 = vmatprep.subr.bf16.mxu0 0
    %213 = vmatpush1.bf16.msra.mxu0 0
    %214 = vmatprep.subr.bf16.mxu0 0
    %215 = vmatpush1.bf16.msra.mxu0 0
    %216 = vmatprep.subr.bf16.mxu0 0
    %217 = vmatpush1.bf16.msra.mxu0 0
    %218 = vmatprep.subr.bf16.mxu0 0
    %219 = vmatpush1.bf16.msra.mxu0 0
    %220 = vmatprep.subr.bf16.mxu0 0
    %221 = vmatpush1.bf16.msra.mxu0 %v203
    %222 = vmatprep.subr.bf16.mxu0 0
    %223 = vmatpush1.bf16.msra.mxu0 %v202
    %224 = vmatprep.subr.bf16.mxu0 0
    %225 = vmatpush1.bf16.msra.mxu0 %v201
    %226 = vmatprep.subr.bf16.mxu0 0
    %227 = vmatpush1.bf16.msra.mxu0 %v200
    %228 = vmatprep.subr.bf16.mxu0 0
    %229 = vmatpush2.bf16.msra.mxu0 0
    %230 = vmatprep.subr.bf16.mxu0 0
    %231 = vmatpush2.bf16.msra.mxu0 0
    %232 = vmatprep.subr.bf16.mxu0 0
    %233 = vmatpush2.bf16.msra.mxu0 0
    %234 = vmatprep.subr.bf16.mxu0 0
    %235 = vmatpush2.bf16.msra.mxu0 0
    %236 = vmatprep.subr.bf16.mxu0 0
    %237 = vmatpush2.bf16.msra.mxu0 0
    %238 = vmatprep.subr.bf16.mxu0 0
    %239 = vmatpush2.bf16.msra.mxu0 0
    %240 = vmatprep.subr.bf16.mxu0 0
    %241 = vmatpush2.bf16.msra.mxu0 0
    %242 = vmatprep.subr.bf16.mxu0 0
    %243 = vmatpush2.bf16.msra.mxu0 0
    %244 = vmatprep.mubr.bf16.mxu0 0
    %245 = vmatmul.mubr.bf16.gmra.mxu0 %v210
    %v246 = vpop.f32.mrf.mxu0
    %v247 = vadd.f32 %v182, %v246
    %v248 = vpop.f32.mrf.mxu0
    %v249 = vpop.f32.mrf.mxu0
    %v250 = vadd.f32 %v182, %v249
    %v251 = vpop.f32.mrf.mxu0
    %252 = vdwg.mxu0
    %v253 = vld [vmem:[%s8] sm:$0xf]
    %v254 = vld [vmem:[%s8 + $0x4] sm:$0xf]
    %v255 = vld [vmem:[%s8 + $0x8] sm:$0xf]
    %v256 = vld [vmem:[%s8 + $0xc] sm:$0xf]
    %v257 = vld [vmem:[%s8 + $0x10] sm:$0xf]
    %v258 = vld [vmem:[%s8 + $0x14] sm:$0xf]
    %v259 = vld [vmem:[%s8 + $0x18] sm:$0xf]
    %v260 = vld [vmem:[%s8 + $0x1c] sm:$0xf]
    %v261 = vld [vmem:[%s9] sm:$0x1]
    %v263 = vlaneseq
    %v264 = vshrl.u32 %v263, 7
    %v265 = vsub.s32 0, %v264
    %v266 = vrot.slane %v261, %v265
    %v276 = vunpack.c.l.b16 %v253
    %v277 = vunpack.c.l.b16 %v254
    %v278 = vunpack.c.l.b16 %v255
    %v279 = vunpack.c.l.b16 %v256
    %v280 = vunpack.c.l.b16 %v257
    %v281 = vunpack.c.l.b16 %v258
    %v282 = vunpack.c.l.b16 %v259
    %v283 = vunpack.c.l.b16 %v260
    %v284 = vpack.c.b16 %v277, %v276
    %v285 = vpack.c.b16 %v279, %v278
    %v286 = vpack.c.b16 %v281, %v280
    %v287 = vpack.c.b16 %v283, %v282
    %292 = vmatprep.subr.bf16.mxu0 0
    %293 = vmatpush1.bf16.msra.mxu0 0
    %294 = vmatprep.subr.bf16.mxu0 0
    %295 = vmatpush1.bf16.msra.mxu0 0
    %296 = vmatprep.subr.bf16.mxu0 0
    %297 = vmatpush1.bf16.msra.mxu0 0
    %298 = vmatprep.subr.bf16.mxu0 0
    %299 = vmatpush1.bf16.msra.mxu0 0
    %300 = vmatprep.subr.bf16.mxu0 0
    %301 = vmatpush1.bf16.msra.mxu0 %v287
    %302 = vmatprep.subr.bf16.mxu0 0
    %303 = vmatpush1.bf16.msra.mxu0 %v286
    %304 = vmatprep.subr.bf16.mxu0 0
    %305 = vmatpush1.bf16.msra.mxu0 %v285
    %306 = vmatprep.subr.bf16.mxu0 0
    %307 = vmatpush1.bf16.msra.mxu0 %v284
    %308 = vmatprep.subr.bf16.mxu0 0
    %309 = vmatpush2.bf16.msra.mxu0 0
    %310 = vmatprep.subr.bf16.mxu0 0
    %311 = vmatpush2.bf16.msra.mxu0 0
    %312 = vmatprep.subr.bf16.mxu0 0
    %313 = vmatpush2.bf16.msra.mxu0 0
    %314 = vmatprep.subr.bf16.mxu0 0
    %315 = vmatpush2.bf16.msra.mxu0 0
    %316 = vmatprep.subr.bf16.mxu0 0
    %317 = vmatpush2.bf16.msra.mxu0 0
    %318 = vmatprep.subr.bf16.mxu0 0
    %319 = vmatpush2.bf16.msra.mxu0 0
    %320 = vmatprep.subr.bf16.mxu0 0
    %321 = vmatpush2.bf16.msra.mxu0 0
    %322 = vmatprep.subr.bf16.mxu0 0
    %323 = vmatpush2.bf16.msra.mxu0 0
    %324 = vmatprep.mubr.bf16.mxu0 0
    %325 = vmatmul.mubr.bf16.gmra.mxu0 %v210
    %v326 = vpop.f32.mrf.mxu0
    %v327 = vadd.f32 %v266, %v326
    %v328 = vpop.f32.mrf.mxu0
    %v329 = vpop.f32.mrf.mxu0
    %v330 = vadd.f32 %v266, %v329
    %v331 = vpop.f32.mrf.mxu0
    %332 = vdwg.mxu0
    %v333 = vadd.f32 %v247, 1.0
    %v334 = vadd.f32 %v250, 1.0
    %v335 = vmul.f32 %v85, %v333
    %v336 = vmul.f32 %v86, %v334
    %v337 = vadd.f32 %v335, %v327
    %v338 = vadd.f32 %v336, %v330
    %v339 = vpack.c.bf16 %v338, %v337
    %v341 = vunpack.c.l.b16 %v339
    %v342 = vunpack.c.h.b16 %v339
    %v343 = vpack.c.b16 %v341, %v341
    %v344 = vpack.c.b16 %v342, %v342
    %vm347 = vcmask 257024
    %348 = vst.msk [vmem:[#allocation2] sm:$0xf] %vm347, %v343
    %349 = vst.msk [vmem:[#allocation2 + $0x4] sm:$0xf] %vm347, %v344
    // Predicated region
    $region42: #{tpu_custom_call.1} parent=1 // pred_check
      _
    $region43: #{tpu_custom_call.1} parent=1 // pred_check_branch
      %351 = sbr.rel (0) target = $region45
    $region44: #{tpu_custom_call.1} parent=1 // pred_region
      %s353 = ssub.s32 128, 128
      %354 = vsyncadd [#allocation3], %s353
      %s355 = sshll.u32 [#allocation2], 4
      %s356 = int_to_ptr.vmem [resolvable:$true] %s355
      %361 = dma.vmem_to_hbm [thread:$0]  %s356, 128, %s10, [#allocation3], 64, 64, 4
    $region45: #{tpu_custom_call.1} parent=1 // pred_fallthru
      _
    // Predicated region
    $region46: #{tpu_custom_call.1} parent=1 // pred_check
      _
    $region47: #{tpu_custom_call.1} parent=1 // pred_check_branch
      %363 = sbr.rel (0) target = $region49
    $region48: #{tpu_custom_call.1} parent=1 // pred_region
      %364 = dma.done [#allocation3], 128
    $region49: #{tpu_custom_call.1} parent=1 // pred_fallthru
      _
    %365 = vsyncpa [#allocation3], 1

</llo_original>
